<compile_context>
chip_gen: v5e
topology: v5e:2x2
jax: 0.10.0
libtpu: 0.0.40
codegen_flags: <defaults>
</compile_context>

<pallas_src>
import jax
import jax.numpy as jnp
from jax.experimental import pallas as pl
from jax.experimental.pallas import tpu as pltpu

BATCH = 2
SEQ = 8
INPUT = 3       # input_size  (module default)
HIDDEN = 8      # hidden_size (module default)
NUM_LAYERS = 1  # module default


def gru_encoder_kernel(x2d_ref, lens_ref, wih_ref, whh_ref, bcomb_ref, bhn_ref,
                       out_ref, hid_ref):
    f32 = jnp.float32
    B, H = hid_ref.shape
    S = out_ref.shape[1] // H

    # Loop-invariant loads, hoisted once (JAX does not CSE broadcasts across iterations).
    wih = wih_ref[...]       # (I, 3H)  columns = [r | z | n]
    whh = whh_ref[...]       # (H, 3H)
    bcomb = bcomb_ref[...]   # (1, 3H)  [b_ir+b_hr | b_iz+b_hz | b_in]
    bhn = bhn_ref[...]       # (1, H)   b_hn (kept separate: multiplied by r)
    lens = lens_ref[...]     # (B, 1)   int32 sequence lengths

    # Hoisted input projection: ONE matmul covering every timestep.
    gi_all = jnp.dot(x2d_ref[...], wih, preferred_element_type=f32) + bcomb   # (S*B, 3H)

    h = jnp.zeros((B, H), f32)
    outs = []
    # Fully unrolled recurrence (S static) -> static slices, cross-step scheduling visible.
    for t in range(S):
        gi = gi_all[t * B:(t + 1) * B, :]                    # (B, 3H) static row slice
        gh = jnp.dot(h, whh, preferred_element_type=f32)     # (B, 3H): only per-step matmul

        rz = jax.nn.sigmoid(gi[:, :2 * H] + gh[:, :2 * H])   # r and z in one EUP pass
        r = rz[:, :H]
        z = rz[:, H:]
        n = jnp.tanh(gi[:, 2 * H:] + r * (gh[:, 2 * H:] + bhn))
        h_new = n + z * (h - n)                              # == (1-z)*n + z*h, fewer ops

        m = (lens > t).astype(f32)                           # (B,1): in-kernel length mask
        outs.append(m * h_new)                               # padded steps -> exactly 0
        h = h + m * (h_new - h)                              # freeze finished sequences

    # Single lane-dense batch-first store: (B, S*H); wrapper reshapes to (B, S, H).
    out_ref[...] = jnp.concatenate(outs, axis=-1)
    hid_ref[...] = h                                         # final hidden (packed semantics)


def init_params(key):
    """PyTorch nn.GRU init: U(-1/sqrt(H), 1/sqrt(H)); weights stored in fused-gate layout."""
    k = jax.random.split(key, 4)
    s = 1.0 / float(HIDDEN) ** 0.5
    wih = jax.random.uniform(k[0], (INPUT, 3 * HIDDEN), jnp.float32, -s, s)    # W_ih^T [r|z|n]
    whh = jax.random.uniform(k[1], (HIDDEN, 3 * HIDDEN), jnp.float32, -s, s)   # W_hh^T [r|z|n]
    b_ih = jax.random.uniform(k[2], (3 * HIDDEN,), jnp.float32, -s, s)
    b_hh = jax.random.uniform(k[3], (3 * HIDDEN,), jnp.float32, -s, s)
    # Pre-add b_ih + b_hh for the r/z gates; keep b_in in the combined vector, b_hn separate.
    b_comb = jnp.concatenate(
        [b_ih[:2 * HIDDEN] + b_hh[:2 * HIDDEN], b_ih[2 * HIDDEN:]])[None, :]   # (1, 3H)
    b_hn = b_hh[2 * HIDDEN:][None, :]                                          # (1, H)
    return wih, whh, b_comb, b_hn


@jax.jit
def encoder_forward(x, lengths, params):
    """Mirrors Encoder.forward: returns (output[B,S,H] zero-padded past lengths,
    hidden[num_layers,B,H])."""
    B, S, I = x.shape
    wih, whh, b_comb, b_hn = params
    H = whh.shape[0]

    # Time-major, flattened to 2-D so the kernel's input projection is one plain matmul.
    x2d = jnp.transpose(x, (1, 0, 2)).reshape(S * B, I).astype(jnp.float32)    # (S*B, I)
    lens2d = lengths.astype(jnp.int32).reshape(B, 1)                           # (B, 1)

    vmem = pl.BlockSpec(memory_space=pltpu.MemorySpace.VMEM)
    out2d, hid = pl.pallas_call(
        gru_encoder_kernel,
        out_shape=(jax.ShapeDtypeStruct((B, S * H), jnp.float32),
                   jax.ShapeDtypeStruct((B, H), jnp.float32)),
        in_specs=[vmem] * 6,
        out_specs=(vmem, vmem),
    )(x2d, lens2d, wih, whh, b_comb, b_hn)

    output = out2d.reshape(B, S, H)             # batch-first (B, S, H) — reshape, no transpose
    hidden = hid[None, :, :]                    # (num_layers=1, B, H)
    return output, hidden


def reference_forward(x, lengths, params):
    """Pure-JAX reference of the masked GRU (same math as a packed PyTorch GRU, eval mode)."""
    wih, whh, b_comb, b_hn = params
    B, S, I = x.shape
    H = whh.shape[0]
    mask = (jnp.arange(S)[None, :] < lengths[:, None]).astype(jnp.float32)     # (B, S)
    h = jnp.zeros((B, H), jnp.float32)
    outs = []
    for t in range(S):
        gi = x[:, t, :].astype(jnp.float32) @ wih + b_comb
        gh = h @ whh
        r = jax.nn.sigmoid(gi[:, :H] + gh[:, :H])
        z = jax.nn.sigmoid(gi[:, H:2 * H] + gh[:, H:2 * H])
        n = jnp.tanh(gi[:, 2 * H:] + r * (gh[:, 2 * H:] + b_hn))
        h_new = (1.0 - z) * n + z * h
        m = mask[:, t:t + 1]
        outs.append(m * h_new)
        h = m * h_new + (1.0 - m) * h
    return jnp.stack(outs, axis=1), h[None, :, :]


if __name__ == "__main__":
    key = jax.random.PRNGKey(0)
    kx, kp = jax.random.split(key)
    x = jax.random.normal(kx, (BATCH, SEQ, INPUT), dtype=jnp.float32)
    lengths = jnp.array([SEQ, 5], dtype=jnp.int32)   # variable lengths (enforce_sorted=False)
    params = init_params(kp)

    output, hidden = encoder_forward(x, lengths, params)
    jax.block_until_ready((output, hidden))

    assert output.shape == (BATCH, SEQ, HIDDEN)
    assert hidden.shape == (NUM_LAYERS, BATCH, HIDDEN)
    assert bool(jnp.all(jnp.isfinite(output))) and bool(jnp.all(jnp.isfinite(hidden)))

    ref_out, ref_hid = reference_forward(x, lengths, params)
    assert bool(jnp.allclose(output, ref_out, atol=1e-5, rtol=1e-5))
    assert bool(jnp.allclose(hidden, ref_hid, atol=1e-5, rtol=1e-5))
    # padded positions must be exactly zero, like pad_packed_sequence
    assert float(jnp.max(jnp.abs(output[1, 5:, :]))) == 0.0

    print("KERNEL_OK")
</pallas_src>

<mosaic_0001>
module attributes {stable_mosaic.version = 11 : i64} {
  func.func @gru_encoder_kernel(%arg0: memref<16x3xf32, #tpu.memory_space<vmem>>, %arg1: memref<2x1xi32, #tpu.memory_space<vmem>>, %arg2: memref<3x24xf32, #tpu.memory_space<vmem>>, %arg3: memref<8x24xf32, #tpu.memory_space<vmem>>, %arg4: memref<1x24xf32, #tpu.memory_space<vmem>>, %arg5: memref<1x8xf32, #tpu.memory_space<vmem>>, %arg6: memref<2x64xf32, #tpu.memory_space<vmem>>, %arg7: memref<2x8xf32, #tpu.memory_space<vmem>>) attributes {dimension_semantics = [], scalar_prefetch = 0 : i64, scratch_operands = 0 : i64, tpu.core_type = #tpu.core_type<tc>} {
    %c0 = arith.constant 0 : index
    %c0_0 = arith.constant 0 : index
    %0 = vector.load %arg2[%c0, %c0_0] : memref<3x24xf32, #tpu.memory_space<vmem>>, vector<3x24xf32>
    %c0_1 = arith.constant 0 : index
    %c0_2 = arith.constant 0 : index
    %1 = vector.load %arg3[%c0_1, %c0_2] : memref<8x24xf32, #tpu.memory_space<vmem>>, vector<8x24xf32>
    %c0_3 = arith.constant 0 : index
    %c0_4 = arith.constant 0 : index
    %2 = vector.load %arg4[%c0_3, %c0_4] : memref<1x24xf32, #tpu.memory_space<vmem>>, vector<1x24xf32>
    %c0_5 = arith.constant 0 : index
    %c0_6 = arith.constant 0 : index
    %3 = vector.load %arg5[%c0_5, %c0_6] : memref<1x8xf32, #tpu.memory_space<vmem>>, vector<1x8xf32>
    %c0_7 = arith.constant 0 : index
    %c0_8 = arith.constant 0 : index
    %4 = vector.load %arg1[%c0_7, %c0_8] : memref<2x1xi32, #tpu.memory_space<vmem>>, vector<2x1xi32>
    %c0_9 = arith.constant 0 : index
    %c0_10 = arith.constant 0 : index
    %5 = vector.load %arg0[%c0_9, %c0_10] : memref<16x3xf32, #tpu.memory_space<vmem>>, vector<16x3xf32>
    %cst = arith.constant dense<0.000000e+00> : vector<16x24xf32>
    %6 = tpu.matmul %5, %0, %cst {dimension_numbers = #tpu.dot_dimension_numbers<[1], [0], [0], [1], [0, 0, 1, 1], [], []>} : vector<16x3xf32>, vector<3x24xf32>, vector<16x24xf32> -> vector<16x24xf32>
    %7 = vector.broadcast %2 : vector<1x24xf32> to vector<16x24xf32>
    %8 = arith.addf %6, %7 : vector<16x24xf32>
    %cst_11 = arith.constant 0.000000e+00 : f32
    %9 = vector.broadcast %cst_11 : f32 to vector<2x8xf32>
    %10 = vector.extract_strided_slice %8 {offsets = [0, 0], sizes = [2, 24], strides = [1, 1]} : vector<16x24xf32> to vector<2x24xf32>
    %cst_12 = arith.constant dense<0.000000e+00> : vector<2x24xf32>
    %11 = tpu.matmul %9, %1, %cst_12 {dimension_numbers = #tpu.dot_dimension_numbers<[1], [0], [0], [1], [0, 0, 1, 1], [], []>} : vector<2x8xf32>, vector<8x24xf32>, vector<2x24xf32> -> vector<2x24xf32>
    %12 = vector.extract_strided_slice %10 {offsets = [0, 0], sizes = [2, 16], strides = [1, 1]} : vector<2x24xf32> to vector<2x16xf32>
    %13 = vector.extract_strided_slice %11 {offsets = [0, 0], sizes = [2, 16], strides = [1, 1]} : vector<2x24xf32> to vector<2x16xf32>
    %14 = arith.addf %12, %13 : vector<2x16xf32>
    %15 = arith.negf %14 : vector<2x16xf32>
    %16 = math.exp %15 : vector<2x16xf32>
    %cst_13 = arith.constant 1.000000e+00 : f32
    %17 = vector.broadcast %cst_13 : f32 to vector<2x16xf32>
    %18 = arith.addf %17, %16 : vector<2x16xf32>
    %19 = arith.divf %17, %18 : vector<2x16xf32>
    %20 = vector.extract_strided_slice %19 {offsets = [0, 0], sizes = [2, 8], strides = [1, 1]} : vector<2x16xf32> to vector<2x8xf32>
    %21 = vector.extract_strided_slice %19 {offsets = [0, 8], sizes = [2, 8], strides = [1, 1]} : vector<2x16xf32> to vector<2x8xf32>
    %22 = vector.extract_strided_slice %10 {offsets = [0, 16], sizes = [2, 8], strides = [1, 1]} : vector<2x24xf32> to vector<2x8xf32>
    %23 = vector.extract_strided_slice %11 {offsets = [0, 16], sizes = [2, 8], strides = [1, 1]} : vector<2x24xf32> to vector<2x8xf32>
    %24 = vector.broadcast %3 : vector<1x8xf32> to vector<2x8xf32>
    %25 = arith.addf %23, %24 : vector<2x8xf32>
    %26 = arith.mulf %20, %25 : vector<2x8xf32>
    %27 = arith.addf %22, %26 : vector<2x8xf32>
    %28 = math.tanh %27 : vector<2x8xf32>
    %29 = arith.subf %9, %28 : vector<2x8xf32>
    %30 = arith.mulf %21, %29 : vector<2x8xf32>
    %31 = arith.addf %28, %30 : vector<2x8xf32>
    %c0_i32 = arith.constant 0 : i32
    %32 = vector.broadcast %c0_i32 : i32 to vector<2x1xi32>
    %33 = arith.cmpi sgt, %4, %32 : vector<2x1xi32>
    %34 = arith.extui %33 : vector<2x1xi1> to vector<2x1xi32>
    %35 = arith.sitofp %34 : vector<2x1xi32> to vector<2x1xf32>
    %36 = vector.broadcast %35 : vector<2x1xf32> to vector<2x8xf32>
    %37 = arith.mulf %36, %31 : vector<2x8xf32>
    %38 = arith.subf %31, %9 : vector<2x8xf32>
    %39 = vector.broadcast %35 : vector<2x1xf32> to vector<2x8xf32>
    %40 = arith.mulf %39, %38 : vector<2x8xf32>
    %41 = arith.addf %9, %40 : vector<2x8xf32>
    %42 = vector.extract_strided_slice %8 {offsets = [2, 0], sizes = [2, 24], strides = [1, 1]} : vector<16x24xf32> to vector<2x24xf32>
    %cst_14 = arith.constant dense<0.000000e+00> : vector<2x24xf32>
    %43 = tpu.matmul %41, %1, %cst_14 {dimension_numbers = #tpu.dot_dimension_numbers<[1], [0], [0], [1], [0, 0, 1, 1], [], []>} : vector<2x8xf32>, vector<8x24xf32>, vector<2x24xf32> -> vector<2x24xf32>
    %44 = vector.extract_strided_slice %42 {offsets = [0, 0], sizes = [2, 16], strides = [1, 1]} : vector<2x24xf32> to vector<2x16xf32>
    %45 = vector.extract_strided_slice %43 {offsets = [0, 0], sizes = [2, 16], strides = [1, 1]} : vector<2x24xf32> to vector<2x16xf32>
    %46 = arith.addf %44, %45 : vector<2x16xf32>
    %47 = arith.negf %46 : vector<2x16xf32>
    %48 = math.exp %47 : vector<2x16xf32>
    %cst_15 = arith.constant 1.000000e+00 : f32
    %49 = vector.broadcast %cst_15 : f32 to vector<2x16xf32>
    %50 = arith.addf %49, %48 : vector<2x16xf32>
    %51 = arith.divf %49, %50 : vector<2x16xf32>
    %52 = vector.extract_strided_slice %51 {offsets = [0, 0], sizes = [2, 8], strides = [1, 1]} : vector<2x16xf32> to vector<2x8xf32>
    %53 = vector.extract_strided_slice %51 {offsets = [0, 8], sizes = [2, 8], strides = [1, 1]} : vector<2x16xf32> to vector<2x8xf32>
    %54 = vector.extract_strided_slice %42 {offsets = [0, 16], sizes = [2, 8], strides = [1, 1]} : vector<2x24xf32> to vector<2x8xf32>
    %55 = vector.extract_strided_slice %43 {offsets = [0, 16], sizes = [2, 8], strides = [1, 1]} : vector<2x24xf32> to vector<2x8xf32>
    %56 = vector.broadcast %3 : vector<1x8xf32> to vector<2x8xf32>
    %57 = arith.addf %55, %56 : vector<2x8xf32>
    %58 = arith.mulf %52, %57 : vector<2x8xf32>
    %59 = arith.addf %54, %58 : vector<2x8xf32>
    %60 = math.tanh %59 : vector<2x8xf32>
    %61 = arith.subf %41, %60 : vector<2x8xf32>
    %62 = arith.mulf %53, %61 : vector<2x8xf32>
    %63 = arith.addf %60, %62 : vector<2x8xf32>
    %c1_i32 = arith.constant 1 : i32
    %64 = vector.broadcast %c1_i32 : i32 to vector<2x1xi32>
    %65 = arith.cmpi sgt, %4, %64 : vector<2x1xi32>
    %66 = arith.extui %65 : vector<2x1xi1> to vector<2x1xi32>
    %67 = arith.sitofp %66 : vector<2x1xi32> to vector<2x1xf32>
    %68 = vector.broadcast %67 : vector<2x1xf32> to vector<2x8xf32>
    %69 = arith.mulf %68, %63 : vector<2x8xf32>
    %70 = arith.subf %63, %41 : vector<2x8xf32>
    %71 = vector.broadcast %67 : vector<2x1xf32> to vector<2x8xf32>
    %72 = arith.mulf %71, %70 : vector<2x8xf32>
    %73 = arith.addf %41, %72 : vector<2x8xf32>
    %74 = vector.extract_strided_slice %8 {offsets = [4, 0], sizes = [2, 24], strides = [1, 1]} : vector<16x24xf32> to vector<2x24xf32>
    %cst_16 = arith.constant dense<0.000000e+00> : vector<2x24xf32>
    %75 = tpu.matmul %73, %1, %cst_16 {dimension_numbers = #tpu.dot_dimension_numbers<[1], [0], [0], [1], [0, 0, 1, 1], [], []>} : vector<2x8xf32>, vector<8x24xf32>, vector<2x24xf32> -> vector<2x24xf32>
    %76 = vector.extract_strided_slice %74 {offsets = [0, 0], sizes = [2, 16], strides = [1, 1]} : vector<2x24xf32> to vector<2x16xf32>
    %77 = vector.extract_strided_slice %75 {offsets = [0, 0], sizes = [2, 16], strides = [1, 1]} : vector<2x24xf32> to vector<2x16xf32>
    %78 = arith.addf %76, %77 : vector<2x16xf32>
    %79 = arith.negf %78 : vector<2x16xf32>
    %80 = math.exp %79 : vector<2x16xf32>
    %cst_17 = arith.constant 1.000000e+00 : f32
    %81 = vector.broadcast %cst_17 : f32 to vector<2x16xf32>
    %82 = arith.addf %81, %80 : vector<2x16xf32>
    %83 = arith.divf %81, %82 : vector<2x16xf32>
    %84 = vector.extract_strided_slice %83 {offsets = [0, 0], sizes = [2, 8], strides = [1, 1]} : vector<2x16xf32> to vector<2x8xf32>
    %85 = vector.extract_strided_slice %83 {offsets = [0, 8], sizes = [2, 8], strides = [1, 1]} : vector<2x16xf32> to vector<2x8xf32>
    %86 = vector.extract_strided_slice %74 {offsets = [0, 16], sizes = [2, 8], strides = [1, 1]} : vector<2x24xf32> to vector<2x8xf32>
    %87 = vector.extract_strided_slice %75 {offsets = [0, 16], sizes = [2, 8], strides = [1, 1]} : vector<2x24xf32> to vector<2x8xf32>
    %88 = vector.broadcast %3 : vector<1x8xf32> to vector<2x8xf32>
    %89 = arith.addf %87, %88 : vector<2x8xf32>
    %90 = arith.mulf %84, %89 : vector<2x8xf32>
    %91 = arith.addf %86, %90 : vector<2x8xf32>
    %92 = math.tanh %91 : vector<2x8xf32>
    %93 = arith.subf %73, %92 : vector<2x8xf32>
    %94 = arith.mulf %85, %93 : vector<2x8xf32>
    %95 = arith.addf %92, %94 : vector<2x8xf32>
    %c2_i32 = arith.constant 2 : i32
    %96 = vector.broadcast %c2_i32 : i32 to vector<2x1xi32>
    %97 = arith.cmpi sgt, %4, %96 : vector<2x1xi32>
    %98 = arith.extui %97 : vector<2x1xi1> to vector<2x1xi32>
    %99 = arith.sitofp %98 : vector<2x1xi32> to vector<2x1xf32>
    %100 = vector.broadcast %99 : vector<2x1xf32> to vector<2x8xf32>
    %101 = arith.mulf %100, %95 : vector<2x8xf32>
    %102 = arith.subf %95, %73 : vector<2x8xf32>
    %103 = vector.broadcast %99 : vector<2x1xf32> to vector<2x8xf32>
    %104 = arith.mulf %103, %102 : vector<2x8xf32>
    %105 = arith.addf %73, %104 : vector<2x8xf32>
    %106 = vector.extract_strided_slice %8 {offsets = [6, 0], sizes = [2, 24], strides = [1, 1]} : vector<16x24xf32> to vector<2x24xf32>
    %cst_18 = arith.constant dense<0.000000e+00> : vector<2x24xf32>
    %107 = tpu.matmul %105, %1, %cst_18 {dimension_numbers = #tpu.dot_dimension_numbers<[1], [0], [0], [1], [0, 0, 1, 1], [], []>} : vector<2x8xf32>, vector<8x24xf32>, vector<2x24xf32> -> vector<2x24xf32>
    %108 = vector.extract_strided_slice %106 {offsets = [0, 0], sizes = [2, 16], strides = [1, 1]} : vector<2x24xf32> to vector<2x16xf32>
    %109 = vector.extract_strided_slice %107 {offsets = [0, 0], sizes = [2, 16], strides = [1, 1]} : vector<2x24xf32> to vector<2x16xf32>
    %110 = arith.addf %108, %109 : vector<2x16xf32>
    %111 = arith.negf %110 : vector<2x16xf32>
    %112 = math.exp %111 : vector<2x16xf32>
    %cst_19 = arith.constant 1.000000e+00 : f32
    %113 = vector.broadcast %cst_19 : f32 to vector<2x16xf32>
    %114 = arith.addf %113, %112 : vector<2x16xf32>
    %115 = arith.divf %113, %114 : vector<2x16xf32>
    %116 = vector.extract_strided_slice %115 {offsets = [0, 0], sizes = [2, 8], strides = [1, 1]} : vector<2x16xf32> to vector<2x8xf32>
    %117 = vector.extract_strided_slice %115 {offsets = [0, 8], sizes = [2, 8], strides = [1, 1]} : vector<2x16xf32> to vector<2x8xf32>
    %118 = vector.extract_strided_slice %106 {offsets = [0, 16], sizes = [2, 8], strides = [1, 1]} : vector<2x24xf32> to vector<2x8xf32>
    %119 = vector.extract_strided_slice %107 {offsets = [0, 16], sizes = [2, 8], strides = [1, 1]} : vector<2x24xf32> to vector<2x8xf32>
    %120 = vector.broadcast %3 : vector<1x8xf32> to vector<2x8xf32>
    %121 = arith.addf %119, %120 : vector<2x8xf32>
    %122 = arith.mulf %116, %121 : vector<2x8xf32>
    %123 = arith.addf %118, %122 : vector<2x8xf32>
    %124 = math.tanh %123 : vector<2x8xf32>
    %125 = arith.subf %105, %124 : vector<2x8xf32>
    %126 = arith.mulf %117, %125 : vector<2x8xf32>
    %127 = arith.addf %124, %126 : vector<2x8xf32>
    %c3_i32 = arith.constant 3 : i32
    %128 = vector.broadcast %c3_i32 : i32 to vector<2x1xi32>
    %129 = arith.cmpi sgt, %4, %128 : vector<2x1xi32>
    %130 = arith.extui %129 : vector<2x1xi1> to vector<2x1xi32>
    %131 = arith.sitofp %130 : vector<2x1xi32> to vector<2x1xf32>
    %132 = vector.broadcast %131 : vector<2x1xf32> to vector<2x8xf32>
    %133 = arith.mulf %132, %127 : vector<2x8xf32>
    %134 = arith.subf %127, %105 : vector<2x8xf32>
    %135 = vector.broadcast %131 : vector<2x1xf32> to vector<2x8xf32>
    %136 = arith.mulf %135, %134 : vector<2x8xf32>
    %137 = arith.addf %105, %136 : vector<2x8xf32>
    %138 = vector.extract_strided_slice %8 {offsets = [8, 0], sizes = [2, 24], strides = [1, 1]} : vector<16x24xf32> to vector<2x24xf32>
    %cst_20 = arith.constant dense<0.000000e+00> : vector<2x24xf32>
    %139 = tpu.matmul %137, %1, %cst_20 {dimension_numbers = #tpu.dot_dimension_numbers<[1], [0], [0], [1], [0, 0, 1, 1], [], []>} : vector<2x8xf32>, vector<8x24xf32>, vector<2x24xf32> -> vector<2x24xf32>
    %140 = vector.extract_strided_slice %138 {offsets = [0, 0], sizes = [2, 16], strides = [1, 1]} : vector<2x24xf32> to vector<2x16xf32>
    %141 = vector.extract_strided_slice %139 {offsets = [0, 0], sizes = [2, 16], strides = [1, 1]} : vector<2x24xf32> to vector<2x16xf32>
    %142 = arith.addf %140, %141 : vector<2x16xf32>
    %143 = arith.negf %142 : vector<2x16xf32>
    %144 = math.exp %143 : vector<2x16xf32>
    %cst_21 = arith.constant 1.000000e+00 : f32
    %145 = vector.broadcast %cst_21 : f32 to vector<2x16xf32>
    %146 = arith.addf %145, %144 : vector<2x16xf32>
    %147 = arith.divf %145, %146 : vector<2x16xf32>
    %148 = vector.extract_strided_slice %147 {offsets = [0, 0], sizes = [2, 8], strides = [1, 1]} : vector<2x16xf32> to vector<2x8xf32>
    %149 = vector.extract_strided_slice %147 {offsets = [0, 8], sizes = [2, 8], strides = [1, 1]} : vector<2x16xf32> to vector<2x8xf32>
    %150 = vector.extract_strided_slice %138 {offsets = [0, 16], sizes = [2, 8], strides = [1, 1]} : vector<2x24xf32> to vector<2x8xf32>
    %151 = vector.extract_strided_slice %139 {offsets = [0, 16], sizes = [2, 8], strides = [1, 1]} : vector<2x24xf32> to vector<2x8xf32>
    %152 = vector.broadcast %3 : vector<1x8xf32> to vector<2x8xf32>
    %153 = arith.addf %151, %152 : vector<2x8xf32>
    %154 = arith.mulf %148, %153 : vector<2x8xf32>
    %155 = arith.addf %150, %154 : vector<2x8xf32>
    %156 = math.tanh %155 : vector<2x8xf32>
    %157 = arith.subf %137, %156 : vector<2x8xf32>
    %158 = arith.mulf %149, %157 : vector<2x8xf32>
    %159 = arith.addf %156, %158 : vector<2x8xf32>
    %c4_i32 = arith.constant 4 : i32
    %160 = vector.broadcast %c4_i32 : i32 to vector<2x1xi32>
    %161 = arith.cmpi sgt, %4, %160 : vector<2x1xi32>
    %162 = arith.extui %161 : vector<2x1xi1> to vector<2x1xi32>
    %163 = arith.sitofp %162 : vector<2x1xi32> to vector<2x1xf32>
    %164 = vector.broadcast %163 : vector<2x1xf32> to vector<2x8xf32>
    %165 = arith.mulf %164, %159 : vector<2x8xf32>
    %166 = arith.subf %159, %137 : vector<2x8xf32>
    %167 = vector.broadcast %163 : vector<2x1xf32> to vector<2x8xf32>
    %168 = arith.mulf %167, %166 : vector<2x8xf32>
    %169 = arith.addf %137, %168 : vector<2x8xf32>
    %170 = vector.extract_strided_slice %8 {offsets = [10, 0], sizes = [2, 24], strides = [1, 1]} : vector<16x24xf32> to vector<2x24xf32>
    %cst_22 = arith.constant dense<0.000000e+00> : vector<2x24xf32>
    %171 = tpu.matmul %169, %1, %cst_22 {dimension_numbers = #tpu.dot_dimension_numbers<[1], [0], [0], [1], [0, 0, 1, 1], [], []>} : vector<2x8xf32>, vector<8x24xf32>, vector<2x24xf32> -> vector<2x24xf32>
    %172 = vector.extract_strided_slice %170 {offsets = [0, 0], sizes = [2, 16], strides = [1, 1]} : vector<2x24xf32> to vector<2x16xf32>
    %173 = vector.extract_strided_slice %171 {offsets = [0, 0], sizes = [2, 16], strides = [1, 1]} : vector<2x24xf32> to vector<2x16xf32>
    %174 = arith.addf %172, %173 : vector<2x16xf32>
    %175 = arith.negf %174 : vector<2x16xf32>
    %176 = math.exp %175 : vector<2x16xf32>
    %cst_23 = arith.constant 1.000000e+00 : f32
    %177 = vector.broadcast %cst_23 : f32 to vector<2x16xf32>
    %178 = arith.addf %177, %176 : vector<2x16xf32>
    %179 = arith.divf %177, %178 : vector<2x16xf32>
    %180 = vector.extract_strided_slice %179 {offsets = [0, 0], sizes = [2, 8], strides = [1, 1]} : vector<2x16xf32> to vector<2x8xf32>
    %181 = vector.extract_strided_slice %179 {offsets = [0, 8], sizes = [2, 8], strides = [1, 1]} : vector<2x16xf32> to vector<2x8xf32>
    %182 = vector.extract_strided_slice %170 {offsets = [0, 16], sizes = [2, 8], strides = [1, 1]} : vector<2x24xf32> to vector<2x8xf32>
    %183 = vector.extract_strided_slice %171 {offsets = [0, 16], sizes = [2, 8], strides = [1, 1]} : vector<2x24xf32> to vector<2x8xf32>
    %184 = vector.broadcast %3 : vector<1x8xf32> to vector<2x8xf32>
    %185 = arith.addf %183, %184 : vector<2x8xf32>
    %186 = arith.mulf %180, %185 : vector<2x8xf32>
    %187 = arith.addf %182, %186 : vector<2x8xf32>
    %188 = math.tanh %187 : vector<2x8xf32>
    %189 = arith.subf %169, %188 : vector<2x8xf32>
    %190 = arith.mulf %181, %189 : vector<2x8xf32>
    %191 = arith.addf %188, %190 : vector<2x8xf32>
    %c5_i32 = arith.constant 5 : i32
    %192 = vector.broadcast %c5_i32 : i32 to vector<2x1xi32>
    %193 = arith.cmpi sgt, %4, %192 : vector<2x1xi32>
    %194 = arith.extui %193 : vector<2x1xi1> to vector<2x1xi32>
    %195 = arith.sitofp %194 : vector<2x1xi32> to vector<2x1xf32>
    %196 = vector.broadcast %195 : vector<2x1xf32> to vector<2x8xf32>
    %197 = arith.mulf %196, %191 : vector<2x8xf32>
    %198 = arith.subf %191, %169 : vector<2x8xf32>
    %199 = vector.broadcast %195 : vector<2x1xf32> to vector<2x8xf32>
    %200 = arith.mulf %199, %198 : vector<2x8xf32>
    %201 = arith.addf %169, %200 : vector<2x8xf32>
    %202 = vector.extract_strided_slice %8 {offsets = [12, 0], sizes = [2, 24], strides = [1, 1]} : vector<16x24xf32> to vector<2x24xf32>
    %cst_24 = arith.constant dense<0.000000e+00> : vector<2x24xf32>
    %203 = tpu.matmul %201, %1, %cst_24 {dimension_numbers = #tpu.dot_dimension_numbers<[1], [0], [0], [1], [0, 0, 1, 1], [], []>} : vector<2x8xf32>, vector<8x24xf32>, vector<2x24xf32> -> vector<2x24xf32>
    %204 = vector.extract_strided_slice %202 {offsets = [0, 0], sizes = [2, 16], strides = [1, 1]} : vector<2x24xf32> to vector<2x16xf32>
    %205 = vector.extract_strided_slice %203 {offsets = [0, 0], sizes = [2, 16], strides = [1, 1]} : vector<2x24xf32> to vector<2x16xf32>
    %206 = arith.addf %204, %205 : vector<2x16xf32>
    %207 = arith.negf %206 : vector<2x16xf32>
    %208 = math.exp %207 : vector<2x16xf32>
    %cst_25 = arith.constant 1.000000e+00 : f32
    %209 = vector.broadcast %cst_25 : f32 to vector<2x16xf32>
    %210 = arith.addf %209, %208 : vector<2x16xf32>
    %211 = arith.divf %209, %210 : vector<2x16xf32>
    %212 = vector.extract_strided_slice %211 {offsets = [0, 0], sizes = [2, 8], strides = [1, 1]} : vector<2x16xf32> to vector<2x8xf32>
    %213 = vector.extract_strided_slice %211 {offsets = [0, 8], sizes = [2, 8], strides = [1, 1]} : vector<2x16xf32> to vector<2x8xf32>
    %214 = vector.extract_strided_slice %202 {offsets = [0, 16], sizes = [2, 8], strides = [1, 1]} : vector<2x24xf32> to vector<2x8xf32>
    %215 = vector.extract_strided_slice %203 {offsets = [0, 16], sizes = [2, 8], strides = [1, 1]} : vector<2x24xf32> to vector<2x8xf32>
    %216 = vector.broadcast %3 : vector<1x8xf32> to vector<2x8xf32>
    %217 = arith.addf %215, %216 : vector<2x8xf32>
    %218 = arith.mulf %212, %217 : vector<2x8xf32>
    %219 = arith.addf %214, %218 : vector<2x8xf32>
    %220 = math.tanh %219 : vector<2x8xf32>
    %221 = arith.subf %201, %220 : vector<2x8xf32>
    %222 = arith.mulf %213, %221 : vector<2x8xf32>
    %223 = arith.addf %220, %222 : vector<2x8xf32>
    %c6_i32 = arith.constant 6 : i32
    %224 = vector.broadcast %c6_i32 : i32 to vector<2x1xi32>
    %225 = arith.cmpi sgt, %4, %224 : vector<2x1xi32>
    %226 = arith.extui %225 : vector<2x1xi1> to vector<2x1xi32>
    %227 = arith.sitofp %226 : vector<2x1xi32> to vector<2x1xf32>
    %228 = vector.broadcast %227 : vector<2x1xf32> to vector<2x8xf32>
    %229 = arith.mulf %228, %223 : vector<2x8xf32>
    %230 = arith.subf %223, %201 : vector<2x8xf32>
    %231 = vector.broadcast %227 : vector<2x1xf32> to vector<2x8xf32>
    %232 = arith.mulf %231, %230 : vector<2x8xf32>
    %233 = arith.addf %201, %232 : vector<2x8xf32>
    %234 = vector.extract_strided_slice %8 {offsets = [14, 0], sizes = [2, 24], strides = [1, 1]} : vector<16x24xf32> to vector<2x24xf32>
    %cst_26 = arith.constant dense<0.000000e+00> : vector<2x24xf32>
    %235 = tpu.matmul %233, %1, %cst_26 {dimension_numbers = #tpu.dot_dimension_numbers<[1], [0], [0], [1], [0, 0, 1, 1], [], []>} : vector<2x8xf32>, vector<8x24xf32>, vector<2x24xf32> -> vector<2x24xf32>
    %236 = vector.extract_strided_slice %234 {offsets = [0, 0], sizes = [2, 16], strides = [1, 1]} : vector<2x24xf32> to vector<2x16xf32>
    %237 = vector.extract_strided_slice %235 {offsets = [0, 0], sizes = [2, 16], strides = [1, 1]} : vector<2x24xf32> to vector<2x16xf32>
    %238 = arith.addf %236, %237 : vector<2x16xf32>
    %239 = arith.negf %238 : vector<2x16xf32>
    %240 = math.exp %239 : vector<2x16xf32>
    %cst_27 = arith.constant 1.000000e+00 : f32
    %241 = vector.broadcast %cst_27 : f32 to vector<2x16xf32>
    %242 = arith.addf %241, %240 : vector<2x16xf32>
    %243 = arith.divf %241, %242 : vector<2x16xf32>
    %244 = vector.extract_strided_slice %243 {offsets = [0, 0], sizes = [2, 8], strides = [1, 1]} : vector<2x16xf32> to vector<2x8xf32>
    %245 = vector.extract_strided_slice %243 {offsets = [0, 8], sizes = [2, 8], strides = [1, 1]} : vector<2x16xf32> to vector<2x8xf32>
    %246 = vector.extract_strided_slice %234 {offsets = [0, 16], sizes = [2, 8], strides = [1, 1]} : vector<2x24xf32> to vector<2x8xf32>
    %247 = vector.extract_strided_slice %235 {offsets = [0, 16], sizes = [2, 8], strides = [1, 1]} : vector<2x24xf32> to vector<2x8xf32>
    %248 = vector.broadcast %3 : vector<1x8xf32> to vector<2x8xf32>
    %249 = arith.addf %247, %248 : vector<2x8xf32>
    %250 = arith.mulf %244, %249 : vector<2x8xf32>
    %251 = arith.addf %246, %250 : vector<2x8xf32>
    %252 = math.tanh %251 : vector<2x8xf32>
    %253 = arith.subf %233, %252 : vector<2x8xf32>
    %254 = arith.mulf %245, %253 : vector<2x8xf32>
    %255 = arith.addf %252, %254 : vector<2x8xf32>
    %c7_i32 = arith.constant 7 : i32
    %256 = vector.broadcast %c7_i32 : i32 to vector<2x1xi32>
    %257 = arith.cmpi sgt, %4, %256 : vector<2x1xi32>
    %258 = arith.extui %257 : vector<2x1xi1> to vector<2x1xi32>
    %259 = arith.sitofp %258 : vector<2x1xi32> to vector<2x1xf32>
    %260 = vector.broadcast %259 : vector<2x1xf32> to vector<2x8xf32>
    %261 = arith.mulf %260, %255 : vector<2x8xf32>
    %262 = arith.subf %255, %233 : vector<2x8xf32>
    %263 = vector.broadcast %259 : vector<2x1xf32> to vector<2x8xf32>
    %264 = arith.mulf %263, %262 : vector<2x8xf32>
    %265 = arith.addf %233, %264 : vector<2x8xf32>
    %266 = tpu.concatenate %37, %69, %101, %133, %165, %197, %229, %261 in 1 : vector<2x8xf32>, vector<2x8xf32>, vector<2x8xf32>, vector<2x8xf32>, vector<2x8xf32>, vector<2x8xf32>, vector<2x8xf32>, vector<2x8xf32> -> vector<2x64xf32>
    %c0_28 = arith.constant 0 : index
    %c0_29 = arith.constant 0 : index
    %267 = vector.load %arg6[%c0_28, %c0_29] : memref<2x64xf32, #tpu.memory_space<vmem>>, vector<2x64xf32>
    tpu.vector_store %arg6[%c0_28, %c0_29], %266 {strides = array<i32>} : memref<2x64xf32, #tpu.memory_space<vmem>>, vector<2x64xf32>,
    %c0_30 = arith.constant 0 : index
    %c0_31 = arith.constant 0 : index
    %268 = vector.load %arg7[%c0_30, %c0_31] : memref<2x8xf32, #tpu.memory_space<vmem>>, vector<2x8xf32>
    tpu.vector_store %arg7[%c0_30, %c0_31], %265 {strides = array<i32>} : memref<2x8xf32, #tpu.memory_space<vmem>>, vector<2x8xf32>,
    return
  }
}

</mosaic_0001>

<llo_original>
// kernel: encoder_forward.1
$region0: #{encoder_forward.1}
  #allocation0 [shape = 'u32[]', space=smem, size = 0x4, offset = 0x4, fixed_abs, tag = 'smem constant byte address 0x4 - core index']
  #allocation1 [shape = 'u32[72,128]{1,0:T(1,128)}', space=vmem, size = 0x9000, scoped, tag = 'internal scratch']
  %s0 = inlined_call_operand.vmem [shape: f32[16,3], index: 0, kind: input, shape index: {}]
  %s1 = inlined_call_operand.vmem [shape: s32[2,1], index: 1, kind: input, shape index: {}]
  %s2 = inlined_call_operand.vmem [shape: f32[3,24], index: 2, kind: input, shape index: {}]
  %s3 = inlined_call_operand.vmem [shape: f32[8,24], index: 3, kind: input, shape index: {}]
  %s4 = inlined_call_operand.vmem [shape: f32[1,24], index: 4, kind: input, shape index: {}]
  %s5 = inlined_call_operand.vmem [shape: f32[1,8], index: 5, kind: input, shape index: {}]
  %s6 = inlined_call_operand.vmem [shape: f32[2,64], index: 6, kind: output, shape index: {0}]
  %s7 = inlined_call_operand.hbm [shape: f32[2,8], index: 7, kind: output, shape index: {1}]
  %8 = xla_tuple %s6, %s7
  %s9 = sld [smem:[#allocation0]]
  $region42: #{encoder_forward.1} parent=0
    _
  %s11 = ssub.s32 1, %s9
  %s12 = scalar_select 0, %s11, %s9
  $region1: #{encoder_forward.1} parent=0
    #allocation2 [shape = 'u8[1024]{0}', space=vmem, size = 0x400, scoped, tag = 'output window, operand 1, single buffered']
    #allocation3 [shape = 's32[1]{0}', space=sflag, size = 0x4, scoped, tag = 'scoped memory for encoder_forward.1']
    %13 = vsyncpa [#allocation3], 0
    // Predicated region
    $region2: #{encoder_forward.1} parent=1 // pred_check
      _
    $region3: #{encoder_forward.1} parent=1 // pred_check_branch
      %15 = sbr.rel (0) target = $region5
    $region4: #{encoder_forward.1} parent=1 // pred_region
      _
    $region5: #{encoder_forward.1} parent=1 // pred_fallthru
      _
    // Predicated region
    $region6: #{encoder_forward.1} parent=1 // pred_check
      _
    $region7: #{encoder_forward.1} parent=1 // pred_check_branch
      %17 = sbr.rel (0) target = $region9
    $region8: #{encoder_forward.1} parent=1 // pred_region
      _
    $region9: #{encoder_forward.1} parent=1 // pred_fallthru
      _
    // Predicated region
    $region10: #{encoder_forward.1} parent=1 // pred_check
      _
    $region11: #{encoder_forward.1} parent=1 // pred_check_branch
      %19 = sbr.rel (0) target = $region13
    $region12: #{encoder_forward.1} parent=1 // pred_region
      _
    $region13: #{encoder_forward.1} parent=1 // pred_fallthru
      _
    // Predicated region
    $region14: #{encoder_forward.1} parent=1 // pred_check
      _
    $region15: #{encoder_forward.1} parent=1 // pred_check_branch
      %21 = sbr.rel (0) target = $region17
    $region16: #{encoder_forward.1} parent=1 // pred_region
      _
    $region17: #{encoder_forward.1} parent=1 // pred_fallthru
      _
    // Predicated region
    $region18: #{encoder_forward.1} parent=1 // pred_check
      _
    $region19: #{encoder_forward.1} parent=1 // pred_check_branch
      %23 = sbr.rel (0) target = $region21
    $region20: #{encoder_forward.1} parent=1 // pred_region
      _
    $region21: #{encoder_forward.1} parent=1 // pred_fallthru
      _
    // Predicated region
    $region22: #{encoder_forward.1} parent=1 // pred_check
      _
    $region23: #{encoder_forward.1} parent=1 // pred_check_branch
      %25 = sbr.rel (0) target = $region25
    $region24: #{encoder_forward.1} parent=1 // pred_region
      _
    $region25: #{encoder_forward.1} parent=1 // pred_fallthru
      _
    %v26 = vld [vmem:[%s2] sm:$0x7]
    %v27 = vld [vmem:[%s3] sm:$0xff]
    %v28 = vld [vmem:[%s4] sm:$0x1]
    %v29 = vld [vmem:[%s5] sm:$0x1]
    %v30 = vld [vmem:[%s1] sm:$0x3]
    %v31 = vld [vmem:[%s0] sm:$0xff]
    %v32 = vld [vmem:[%s0 + $0x8] sm:$0xff]
    %v34 = vperm.slane %v28, 0
    %vm36 = vcmask 23552
    %v38 = vsel %vm36, %v31, 0
    %v41 = vsel %vm36, %v32, 0
    %vm43 = vcmask 1042432
    %v45 = vsel %vm43, %v26, 0
    %47 = vmatpush.msra.mxu0 0.0
    %48 = vmatpush.msra.mxu0 0.0
    %49 = vmatpush.msra.mxu0 0.0
    %50 = vmatpush.msra.mxu0 0.0
    %51 = vmatpush.msra.mxu0 0.0
    %52 = vmatpush.msra.mxu0 0.0
    %53 = vmatpush.msra.mxu0 0.0
    %54 = vmatpush.msra.mxu0 0.0
    %55 = vmatpush.msra.mxu0 0.0
    %56 = vmatpush.msra.mxu0 0.0
    %57 = vmatpush.msra.mxu0 0.0
    %58 = vmatpush.msra.mxu0 0.0
    %59 = vmatpush.msra.mxu0 0.0
    %60 = vmatpush.msra.mxu0 0.0
    %61 = vmatpush.msra.mxu0 0.0
    %62 = vmatpush.msra.mxu0 %v45
    %63 = vmatmul.f32.gmra.mxu0 %v38
    %v64 = vpop.f32.mrf.mxu0
    %v65 = vadd.f32 %v34, %v64
    %66 = vmatmul.f32.gmra.mxu0 %v41
    %v67 = vpop.f32.mrf.mxu0
    %v68 = vadd.f32 %v34, %v67
    %69 = vdwg.mxu0
    %vm70 = vcmask 64512
    %v72 = vsel %vm70, 0.0, 0
    %74 = vmatpush.msra.mxu0 0.0
    %75 = vmatpush.msra.mxu0 0.0
    %76 = vmatpush.msra.mxu0 0.0
    %77 = vmatpush.msra.mxu0 0.0
    %78 = vmatpush.msra.mxu0 0.0
    %79 = vmatpush.msra.mxu0 0.0
    %80 = vmatpush.msra.mxu0 0.0
    %81 = vmatpush.msra.mxu0 0.0
    %82 = vmatpush.msra.mxu0 0.0
    %83 = vmatpush.msra.mxu0 0.0
    %84 = vmatpush.msra.mxu0 0.0
    %85 = vmatpush.msra.mxu0 0.0
    %86 = vmatpush.msra.mxu0 0.0
    %87 = vmatpush.msra.mxu0 0.0
    %88 = vmatpush.msra.mxu0 0.0
    %89 = vmatpush.msra.mxu0 %v27
    %90 = vmatmul.f32.gmra.mxu0 %v72
    %v91 = vpop.f32.mrf.mxu0
    %v92 = vadd.f32 0.0, %v91
    %93 = vdwg.mxu0
    %v94 = vadd.f32 %v65, %v92
    %v95 = vxor.u32 %v94, 2147483648
    %v96 = vmul.f32 %v95, 1.442695
    %v97 = vpow.pop %v96
    %v98 = vadd.f32 %v97, 1.0
    %v99 = vrcp.pop %v98
    %v100 = vmul.f32 %v98, %v99
    %v101 = vsub.f32 1.0, %v100
    %v102 = vmul.f32 %v99, %v101
    %v103 = vadd.f32 %v99, %v102
    %vm104 = vweird.f32 %v98
    %vm105 = vweird.f32 %v99
    %vm106 = vmor %vm104, %vm105
    %v107 = vsel %vm106, %v99, %v103
    %v108 = vand.u32 2147483647, %v98
    %vm109 = vcmp.eq.f32.partialorder %v108, 8.507059e+37
    %v110 = vand.u32 %v98, 2147483648
    %v111 = vor.u32 1.1754944e-38, %v110
    %v112 = vsel %vm109, %v111, %v107
    %v113 = vmul.f32 1.0, %v112
    %v115 = vperm.slane %v29, 0
    %116 = vrot.lane.b32.xlu0 %v115, 16
    %v117 = vpop.permute.xlu0 %116
    %v119 = vadd.f32 %v92, %v117
    %121 = vrot.lane.b32.xlu0 %v119, 112
    %v122 = vpop.permute.xlu0 %121
    %v124 = vmul.f32 %v113, %v122
    %126 = vrot.lane.b32.xlu0 %v124, 16
    %v127 = vpop.permute.xlu0 %126
    %v129 = vadd.f32 %v65, %v127
    %v130 = vtanh.pop %v129
    %v131 = vsub.f32 0.0, %v130
    %133 = vrot.lane.b32.xlu0 %v131, 120
    %v134 = vpop.permute.xlu0 %133
    %v136 = vmul.f32 %v113, %v134
    %138 = vrot.lane.b32.xlu0 %v136, 8
    %v139 = vpop.permute.xlu0 %138
    %v141 = vadd.f32 %v130, %v139
    %vm142 = vcmp.gt.s32.totalorder %v30, 0
    %v143 = vsel %vm142, 1, 0
    %v144 = vcvt.s32.f32 %v143
    %146 = vset.pattern.permute.xlu0 0
    %147 = vperm.xlu0 %146, %v144
    %v148 = vpop.permute.xlu0 %147
    %v150 = vmul.f32 %v148, %v141
    %v151 = vadd.f32 %v150, 0.0
    %153 = vrot.lane.b32.xlu0 %v151, 112
    %v154 = vpop.permute.xlu0 %153
    %v155 = vsel %vm70, %v154, 0
    %157 = vmatpush.msra.mxu0 0.0
    %158 = vmatpush.msra.mxu0 0.0
    %159 = vmatpush.msra.mxu0 0.0
    %160 = vmatpush.msra.mxu0 0.0
    %161 = vmatpush.msra.mxu0 0.0
    %162 = vmatpush.msra.mxu0 0.0
    %163 = vmatpush.msra.mxu0 0.0
    %164 = vmatpush.msra.mxu0 0.0
    %165 = vmatpush.msra.mxu0 0.0
    %166 = vmatpush.msra.mxu0 0.0
    %167 = vmatpush.msra.mxu0 0.0
    %168 = vmatpush.msra.mxu0 0.0
    %169 = vmatpush.msra.mxu0 0.0
    %170 = vmatpush.msra.mxu0 0.0
    %171 = vmatpush.msra.mxu0 0.0
    %172 = vmatpush.msra.mxu0 %v27
    %173 = vmatmul.f32.gmra.mxu0 %v155
    %v174 = vpop.f32.mrf.mxu0
    %v175 = vadd.f32 0.0, %v174
    %176 = vdwg.mxu0
    %v178 = vrot.slane %v175, 6
    %v180 = vadd.f32 %v65, %v178
    %v181 = vxor.u32 %v180, 2147483648
    %v182 = vmul.f32 %v181, 1.442695
    %v183 = vpow.pop %v182
    %v184 = vadd.f32 %v183, 1.0
    %v185 = vrcp.pop %v184
    %v186 = vmul.f32 %v184, %v185
    %v187 = vsub.f32 1.0, %v186
    %v188 = vmul.f32 %v185, %v187
    %v189 = vadd.f32 %v185, %v188
    %vm190 = vweird.f32 %v184
    %vm191 = vweird.f32 %v185
    %vm192 = vmor %vm190, %vm191
    %v193 = vsel %vm192, %v185, %v189
    %v194 = vand.u32 2147483647, %v184
    %vm195 = vcmp.eq.f32.partialorder %v194, 8.507059e+37
    %v196 = vand.u32 %v184, 2147483648
    %v197 = vor.u32 1.1754944e-38, %v196
    %v198 = vsel %vm195, %v197, %v193
    %v199 = vmul.f32 1.0, %v198
    %v200 = vadd.f32 %v175, %v117
    %v202 = vrot.slane %v200, 6
    %203 = vrot.lane.b32.xlu0 %v202, 112
    %v204 = vpop.permute.xlu0 %203
    %v206 = vmul.f32 %v199, %v204
    %208 = vrot.lane.b32.xlu0 %v206, 16
    %v209 = vpop.permute.xlu0 %208
    %v211 = vadd.f32 %v65, %v209
    %v212 = vtanh.pop %v211
    %v214 = vrot.slane %v212, 2
    %v216 = vsub.f32 %v151, %v214
    %v218 = vrot.slane %v216, 6
    %219 = vrot.lane.b32.xlu0 %v218, 120
    %v220 = vpop.permute.xlu0 %219
    %v222 = vmul.f32 %v199, %v220
    %224 = vrot.lane.b32.xlu0 %v222, 8
    %v225 = vpop.permute.xlu0 %224
    %v227 = vadd.f32 %v212, %v225
    %vm228 = vcmp.gt.s32.totalorder %v30, 1
    %v229 = vsel %vm228, 1, 0
    %v230 = vcvt.s32.f32 %v229
    %232 = vset.pattern.permute.xlu0 0
    %233 = vperm.xlu0 %232, %v230
    %v234 = vpop.permute.xlu0 %233
    %v237 = vrot.slane %v227, 2
    %238 = vrot.lane.b32.xlu0 %v237, 112
    %v239 = vpop.permute.xlu0 %238
    %v241 = vmul.f32 %v234, %v239
    %v242 = vrot.slane %v151, 6
    %v244 = vsub.f32 %v227, %v242
    %v246 = vrot.slane %v244, 2
    %247 = vrot.lane.b32.xlu0 %v246, 112
    %v248 = vpop.permute.xlu0 %247
    %v250 = vmul.f32 %v234, %v248
    %252 = vrot.lane.b32.xlu0 %v250, 16
    %v253 = vpop.permute.xlu0 %252
    %v255 = vadd.f32 %v151, %v253
    %257 = vrot.lane.b32.xlu0 %v255, 112
    %v258 = vpop.permute.xlu0 %257
    %v259 = vsel %vm70, %v258, 0
    %261 = vmatpush.msra.mxu0 0.0
    %262 = vmatpush.msra.mxu0 0.0
    %263 = vmatpush.msra.mxu0 0.0
    %264 = vmatpush.msra.mxu0 0.0
    %265 = vmatpush.msra.mxu0 0.0
    %266 = vmatpush.msra.mxu0 0.0
    %267 = vmatpush.msra.mxu0 0.0
    %268 = vmatpush.msra.mxu0 0.0
    %269 = vmatpush.msra.mxu0 0.0
    %270 = vmatpush.msra.mxu0 0.0
    %271 = vmatpush.msra.mxu0 0.0
    %272 = vmatpush.msra.mxu0 0.0
    %273 = vmatpush.msra.mxu0 0.0
    %274 = vmatpush.msra.mxu0 0.0
    %275 = vmatpush.msra.mxu0 0.0
    %276 = vmatpush.msra.mxu0 %v27
    %277 = vmatmul.f32.gmra.mxu0 %v259
    %v278 = vpop.f32.mrf.mxu0
    %v279 = vadd.f32 0.0, %v278
    %280 = vdwg.mxu0
    %v282 = vrot.slane %v279, 4
    %v284 = vadd.f32 %v65, %v282
    %v285 = vxor.u32 %v284, 2147483648
    %v286 = vmul.f32 %v285, 1.442695
    %v287 = vpow.pop %v286
    %v288 = vadd.f32 %v287, 1.0
    %v289 = vrcp.pop %v288
    %v290 = vmul.f32 %v288, %v289
    %v291 = vsub.f32 1.0, %v290
    %v292 = vmul.f32 %v289, %v291
    %v293 = vadd.f32 %v289, %v292
    %vm294 = vweird.f32 %v288
    %vm295 = vweird.f32 %v289
    %vm296 = vmor %vm294, %vm295
    %v297 = vsel %vm296, %v289, %v293
    %v298 = vand.u32 2147483647, %v288
    %vm299 = vcmp.eq.f32.partialorder %v298, 8.507059e+37
    %v300 = vand.u32 %v288, 2147483648
    %v301 = vor.u32 1.1754944e-38, %v300
    %v302 = vsel %vm299, %v301, %v297
    %v303 = vmul.f32 1.0, %v302
    %v304 = vadd.f32 %v279, %v117
    %v306 = vrot.slane %v304, 4
    %307 = vrot.lane.b32.xlu0 %v306, 112
    %v308 = vpop.permute.xlu0 %307
    %v310 = vmul.f32 %v303, %v308
    %312 = vrot.lane.b32.xlu0 %v310, 16
    %v313 = vpop.permute.xlu0 %312
    %v315 = vadd.f32 %v65, %v313
    %v316 = vtanh.pop %v315
    %v318 = vrot.slane %v316, 4
    %v320 = vsub.f32 %v255, %v318
    %v322 = vrot.slane %v320, 4
    %323 = vrot.lane.b32.xlu0 %v322, 120
    %v324 = vpop.permute.xlu0 %323
    %v326 = vmul.f32 %v303, %v324
    %328 = vrot.lane.b32.xlu0 %v326, 8
    %v329 = vpop.permute.xlu0 %328
    %v331 = vadd.f32 %v316, %v329
    %vm332 = vcmp.gt.s32.totalorder %v30, 2
    %v333 = vsel %vm332, 1, 0
    %v334 = vcvt.s32.f32 %v333
    %336 = vset.pattern.permute.xlu0 0
    %337 = vperm.xlu0 %336, %v334
    %v338 = vpop.permute.xlu0 %337
    %v341 = vrot.slane %v331, 4
    %342 = vrot.lane.b32.xlu0 %v341, 112
    %v343 = vpop.permute.xlu0 %342
    %v345 = vmul.f32 %v338, %v343
    %v346 = vrot.slane %v255, 4
    %v348 = vsub.f32 %v331, %v346
    %v350 = vrot.slane %v348, 4
    %351 = vrot.lane.b32.xlu0 %v350, 112
    %v352 = vpop.permute.xlu0 %351
    %v354 = vmul.f32 %v338, %v352
    %356 = vrot.lane.b32.xlu0 %v354, 16
    %v357 = vpop.permute.xlu0 %356
    %v359 = vadd.f32 %v255, %v357
    %361 = vrot.lane.b32.xlu0 %v359, 112
    %v362 = vpop.permute.xlu0 %361
    %v363 = vsel %vm70, %v362, 0
    %365 = vmatpush.msra.mxu0 0.0
    %366 = vmatpush.msra.mxu0 0.0
    %367 = vmatpush.msra.mxu0 0.0
    %368 = vmatpush.msra.mxu0 0.0
    %369 = vmatpush.msra.mxu0 0.0
    %370 = vmatpush.msra.mxu0 0.0
    %371 = vmatpush.msra.mxu0 0.0
    %372 = vmatpush.msra.mxu0 0.0
    %373 = vmatpush.msra.mxu0 0.0
    %374 = vmatpush.msra.mxu0 0.0
    %375 = vmatpush.msra.mxu0 0.0
    %376 = vmatpush.msra.mxu0 0.0
    %377 = vmatpush.msra.mxu0 0.0
    %378 = vmatpush.msra.mxu0 0.0
    %379 = vmatpush.msra.mxu0 0.0
    %380 = vmatpush.msra.mxu0 %v27
    %381 = vmatmul.f32.gmra.mxu0 %v363
    %v382 = vpop.f32.mrf.mxu0
    %v383 = vadd.f32 0.0, %v382
    %384 = vdwg.mxu0
    %v386 = vrot.slane %v383, 2
    %v388 = vadd.f32 %v65, %v386
    %v389 = vxor.u32 %v388, 2147483648
    %v390 = vmul.f32 %v389, 1.442695
    %v391 = vpow.pop %v390
    %v392 = vadd.f32 %v391, 1.0
    %v393 = vrcp.pop %v392
    %v394 = vmul.f32 %v392, %v393
    %v395 = vsub.f32 1.0, %v394
    %v396 = vmul.f32 %v393, %v395
    %v397 = vadd.f32 %v393, %v396
    %vm398 = vweird.f32 %v392
    %vm399 = vweird.f32 %v393
    %vm400 = vmor %vm398, %vm399
    %v401 = vsel %vm400, %v393, %v397
    %v402 = vand.u32 2147483647, %v392
    %vm403 = vcmp.eq.f32.partialorder %v402, 8.507059e+37
    %v404 = vand.u32 %v392, 2147483648
    %v405 = vor.u32 1.1754944e-38, %v404
    %v406 = vsel %vm403, %v405, %v401
    %v407 = vmul.f32 1.0, %v406
    %v408 = vadd.f32 %v383, %v117
    %v410 = vrot.slane %v408, 2
    %411 = vrot.lane.b32.xlu0 %v410, 112
    %v412 = vpop.permute.xlu0 %411
    %v414 = vmul.f32 %v407, %v412
    %416 = vrot.lane.b32.xlu0 %v414, 16
    %v417 = vpop.permute.xlu0 %416
    %v419 = vadd.f32 %v65, %v417
    %v420 = vtanh.pop %v419
    %v422 = vrot.slane %v420, 6
    %v424 = vsub.f32 %v359, %v422
    %v426 = vrot.slane %v424, 2
    %427 = vrot.lane.b32.xlu0 %v426, 120
    %v428 = vpop.permute.xlu0 %427
    %v430 = vmul.f32 %v407, %v428
    %432 = vrot.lane.b32.xlu0 %v430, 8
    %v433 = vpop.permute.xlu0 %432
    %v435 = vadd.f32 %v420, %v433
    %vm436 = vcmp.gt.s32.totalorder %v30, 3
    %v437 = vsel %vm436, 1, 0
    %v438 = vcvt.s32.f32 %v437
    %440 = vset.pattern.permute.xlu0 0
    %441 = vperm.xlu0 %440, %v438
    %v442 = vpop.permute.xlu0 %441
    %v445 = vrot.slane %v435, 6
    %446 = vrot.lane.b32.xlu0 %v445, 112
    %v447 = vpop.permute.xlu0 %446
    %v449 = vmul.f32 %v442, %v447
    %v450 = vrot.slane %v359, 2
    %v452 = vsub.f32 %v435, %v450
    %v454 = vrot.slane %v452, 6
    %455 = vrot.lane.b32.xlu0 %v454, 112
    %v456 = vpop.permute.xlu0 %455
    %v458 = vmul.f32 %v442, %v456
    %460 = vrot.lane.b32.xlu0 %v458, 16
    %v461 = vpop.permute.xlu0 %460
    %v463 = vadd.f32 %v359, %v461
    %465 = vrot.lane.b32.xlu0 %v463, 112
    %v466 = vpop.permute.xlu0 %465
    %v467 = vsel %vm70, %v466, 0
    %469 = vmatpush.msra.mxu0 0.0
    %470 = vmatpush.msra.mxu0 0.0
    %471 = vmatpush.msra.mxu0 0.0
    %472 = vmatpush.msra.mxu0 0.0
    %473 = vmatpush.msra.mxu0 0.0
    %474 = vmatpush.msra.mxu0 0.0
    %475 = vmatpush.msra.mxu0 0.0
    %476 = vmatpush.msra.mxu0 0.0
    %477 = vmatpush.msra.mxu0 0.0
    %478 = vmatpush.msra.mxu0 0.0
    %479 = vmatpush.msra.mxu0 0.0
    %480 = vmatpush.msra.mxu0 0.0
    %481 = vmatpush.msra.mxu0 0.0
    %482 = vmatpush.msra.mxu0 0.0
    %483 = vmatpush.msra.mxu0 0.0
    %484 = vmatpush.msra.mxu0 %v27
    %485 = vmatmul.f32.gmra.mxu0 %v467
    %v486 = vpop.f32.mrf.mxu0
    %v487 = vadd.f32 0.0, %v486
    %488 = vdwg.mxu0
    %v489 = vadd.f32 %v68, %v487
    %v490 = vxor.u32 %v489, 2147483648
    %v491 = vmul.f32 %v490, 1.442695
    %v492 = vpow.pop %v491
    %v493 = vadd.f32 %v492, 1.0
    %v494 = vrcp.pop %v493
    %v495 = vmul.f32 %v493, %v494
    %v496 = vsub.f32 1.0, %v495
    %v497 = vmul.f32 %v494, %v496
    %v498 = vadd.f32 %v494, %v497
    %vm499 = vweird.f32 %v493
    %vm500 = vweird.f32 %v494
    %vm501 = vmor %vm499, %vm500
    %v502 = vsel %vm501, %v494, %v498
    %v503 = vand.u32 2147483647, %v493
    %vm504 = vcmp.eq.f32.partialorder %v503, 8.507059e+37
    %v505 = vand.u32 %v493, 2147483648
    %v506 = vor.u32 1.1754944e-38, %v505
    %v507 = vsel %vm504, %v506, %v502
    %v508 = vmul.f32 1.0, %v507
    %v509 = vadd.f32 %v487, %v117
    %511 = vrot.lane.b32.xlu0 %v509, 112
    %v512 = vpop.permute.xlu0 %511
    %v514 = vmul.f32 %v508, %v512
    %516 = vrot.lane.b32.xlu0 %v514, 16
    %v517 = vpop.permute.xlu0 %516
    %v519 = vadd.f32 %v68, %v517
    %v520 = vtanh.pop %v519
    %v521 = vsub.f32 %v463, %v520
    %523 = vrot.lane.b32.xlu0 %v521, 120
    %v524 = vpop.permute.xlu0 %523
    %v526 = vmul.f32 %v508, %v524
    %528 = vrot.lane.b32.xlu0 %v526, 8
    %v529 = vpop.permute.xlu0 %528
    %v531 = vadd.f32 %v520, %v529
    %vm532 = vcmp.gt.s32.totalorder %v30, 4
    %v533 = vsel %vm532, 1, 0
    %v534 = vcvt.s32.f32 %v533
    %536 = vset.pattern.permute.xlu0 0
    %537 = vperm.xlu0 %536, %v534
    %v538 = vpop.permute.xlu0 %537
    %v540 = vmul.f32 %v538, %v531
    %v541 = vsub.f32 %v531, %v463
    %v542 = vmul.f32 %v538, %v541
    %v543 = vadd.f32 %v463, %v542
    %545 = vrot.lane.b32.xlu0 %v543, 112
    %v546 = vpop.permute.xlu0 %545
    %v547 = vsel %vm70, %v546, 0
    %549 = vmatpush.msra.mxu0 0.0
    %550 = vmatpush.msra.mxu0 0.0
    %551 = vmatpush.msra.mxu0 0.0
    %552 = vmatpush.msra.mxu0 0.0
    %553 = vmatpush.msra.mxu0 0.0
    %554 = vmatpush.msra.mxu0 0.0
    %555 = vmatpush.msra.mxu0 0.0
    %556 = vmatpush.msra.mxu0 0.0
    %557 = vmatpush.msra.mxu0 0.0
    %558 = vmatpush.msra.mxu0 0.0
    %559 = vmatpush.msra.mxu0 0.0
    %560 = vmatpush.msra.mxu0 0.0
    %561 = vmatpush.msra.mxu0 0.0
    %562 = vmatpush.msra.mxu0 0.0
    %563 = vmatpush.msra.mxu0 0.0
    %564 = vmatpush.msra.mxu0 %v27
    %565 = vmatmul.f32.gmra.mxu0 %v547
    %v566 = vpop.f32.mrf.mxu0
    %v567 = vadd.f32 0.0, %v566
    %568 = vdwg.mxu0
    %v570 = vrot.slane %v567, 6
    %v572 = vadd.f32 %v68, %v570
    %v573 = vxor.u32 %v572, 2147483648
    %v574 = vmul.f32 %v573, 1.442695
    %v575 = vpow.pop %v574
    %v576 = vadd.f32 %v575, 1.0
    %v577 = vrcp.pop %v576
    %v578 = vmul.f32 %v576, %v577
    %v579 = vsub.f32 1.0, %v578
    %v580 = vmul.f32 %v577, %v579
    %v581 = vadd.f32 %v577, %v580
    %vm582 = vweird.f32 %v576
    %vm583 = vweird.f32 %v577
    %vm584 = vmor %vm582, %vm583
    %v585 = vsel %vm584, %v577, %v581
    %v586 = vand.u32 2147483647, %v576
    %vm587 = vcmp.eq.f32.partialorder %v586, 8.507059e+37
    %v588 = vand.u32 %v576, 2147483648
    %v589 = vor.u32 1.1754944e-38, %v588
    %v590 = vsel %vm587, %v589, %v585
    %v591 = vmul.f32 1.0, %v590
    %v592 = vadd.f32 %v567, %v117
    %v594 = vrot.slane %v592, 6
    %595 = vrot.lane.b32.xlu0 %v594, 112
    %v596 = vpop.permute.xlu0 %595
    %v598 = vmul.f32 %v591, %v596
    %600 = vrot.lane.b32.xlu0 %v598, 16
    %v601 = vpop.permute.xlu0 %600
    %v603 = vadd.f32 %v68, %v601
    %v604 = vtanh.pop %v603
    %v606 = vrot.slane %v604, 2
    %v608 = vsub.f32 %v543, %v606
    %v610 = vrot.slane %v608, 6
    %611 = vrot.lane.b32.xlu0 %v610, 120
    %v612 = vpop.permute.xlu0 %611
    %v614 = vmul.f32 %v591, %v612
    %616 = vrot.lane.b32.xlu0 %v614, 8
    %v617 = vpop.permute.xlu0 %616
    %v619 = vadd.f32 %v604, %v617
    %vm620 = vcmp.gt.s32.totalorder %v30, 5
    %v621 = vsel %vm620, 1, 0
    %v622 = vcvt.s32.f32 %v621
    %624 = vset.pattern.permute.xlu0 0
    %625 = vperm.xlu0 %624, %v622
    %v626 = vpop.permute.xlu0 %625
    %v629 = vrot.slane %v619, 2
    %630 = vrot.lane.b32.xlu0 %v629, 112
    %v631 = vpop.permute.xlu0 %630
    %v633 = vmul.f32 %v626, %v631
    %v634 = vrot.slane %v543, 6
    %v636 = vsub.f32 %v619, %v634
    %v638 = vrot.slane %v636, 2
    %639 = vrot.lane.b32.xlu0 %v638, 112
    %v640 = vpop.permute.xlu0 %639
    %v642 = vmul.f32 %v626, %v640
    %644 = vrot.lane.b32.xlu0 %v642, 16
    %v645 = vpop.permute.xlu0 %644
    %v647 = vadd.f32 %v543, %v645
    %649 = vrot.lane.b32.xlu0 %v647, 112
    %v650 = vpop.permute.xlu0 %649
    %v651 = vsel %vm70, %v650, 0
    %653 = vmatpush.msra.mxu0 0.0
    %654 = vmatpush.msra.mxu0 0.0
    %655 = vmatpush.msra.mxu0 0.0
    %656 = vmatpush.msra.mxu0 0.0
    %657 = vmatpush.msra.mxu0 0.0
    %658 = vmatpush.msra.mxu0 0.0
    %659 = vmatpush.msra.mxu0 0.0
    %660 = vmatpush.msra.mxu0 0.0
    %661 = vmatpush.msra.mxu0 0.0
    %662 = vmatpush.msra.mxu0 0.0
    %663 = vmatpush.msra.mxu0 0.0
    %664 = vmatpush.msra.mxu0 0.0
    %665 = vmatpush.msra.mxu0 0.0
    %666 = vmatpush.msra.mxu0 0.0
    %667 = vmatpush.msra.mxu0 0.0
    %668 = vmatpush.msra.mxu0 %v27
    %669 = vmatmul.f32.gmra.mxu0 %v651
    %v670 = vpop.f32.mrf.mxu0
    %v671 = vadd.f32 0.0, %v670
    %672 = vdwg.mxu0
    %v674 = vrot.slane %v671, 4
    %v676 = vadd.f32 %v68, %v674
    %v677 = vxor.u32 %v676, 2147483648
    %v678 = vmul.f32 %v677, 1.442695
    %v679 = vpow.pop %v678
    %v680 = vadd.f32 %v679, 1.0
    %v681 = vrcp.pop %v680
    %v682 = vmul.f32 %v680, %v681
    %v683 = vsub.f32 1.0, %v682
    %v684 = vmul.f32 %v681, %v683
    %v685 = vadd.f32 %v681, %v684
    %vm686 = vweird.f32 %v680
    %vm687 = vweird.f32 %v681
    %vm688 = vmor %vm686, %vm687
    %v689 = vsel %vm688, %v681, %v685
    %v690 = vand.u32 2147483647, %v680
    %vm691 = vcmp.eq.f32.partialorder %v690, 8.507059e+37
    %v692 = vand.u32 %v680, 2147483648
    %v693 = vor.u32 1.1754944e-38, %v692
    %v694 = vsel %vm691, %v693, %v689
    %v695 = vmul.f32 1.0, %v694
    %v696 = vadd.f32 %v671, %v117
    %v698 = vrot.slane %v696, 4
    %699 = vrot.lane.b32.xlu0 %v698, 112
    %v700 = vpop.permute.xlu0 %699
    %v702 = vmul.f32 %v695, %v700
    %704 = vrot.lane.b32.xlu0 %v702, 16
    %v705 = vpop.permute.xlu0 %704
    %v707 = vadd.f32 %v68, %v705
    %v708 = vtanh.pop %v707
    %v710 = vrot.slane %v708, 4
    %v712 = vsub.f32 %v647, %v710
    %v714 = vrot.slane %v712, 4
    %715 = vrot.lane.b32.xlu0 %v714, 120
    %v716 = vpop.permute.xlu0 %715
    %v718 = vmul.f32 %v695, %v716
    %720 = vrot.lane.b32.xlu0 %v718, 8
    %v721 = vpop.permute.xlu0 %720
    %v723 = vadd.f32 %v708, %v721
    %vm724 = vcmp.gt.s32.totalorder %v30, 6
    %v725 = vsel %vm724, 1, 0
    %v726 = vcvt.s32.f32 %v725
    %728 = vset.pattern.permute.xlu0 0
    %729 = vperm.xlu0 %728, %v726
    %v730 = vpop.permute.xlu0 %729
    %v733 = vrot.slane %v723, 4
    %734 = vrot.lane.b32.xlu0 %v733, 112
    %v735 = vpop.permute.xlu0 %734
    %v737 = vmul.f32 %v730, %v735
    %v738 = vrot.slane %v647, 4
    %v740 = vsub.f32 %v723, %v738
    %v742 = vrot.slane %v740, 4
    %743 = vrot.lane.b32.xlu0 %v742, 112
    %v744 = vpop.permute.xlu0 %743
    %v746 = vmul.f32 %v730, %v744
    %748 = vrot.lane.b32.xlu0 %v746, 16
    %v749 = vpop.permute.xlu0 %748
    %v751 = vadd.f32 %v647, %v749
    %753 = vrot.lane.b32.xlu0 %v751, 112
    %v754 = vpop.permute.xlu0 %753
    %v755 = vsel %vm70, %v754, 0
    %757 = vmatpush.msra.mxu0 0.0
    %758 = vmatpush.msra.mxu0 0.0
    %759 = vmatpush.msra.mxu0 0.0
    %760 = vmatpush.msra.mxu0 0.0
    %761 = vmatpush.msra.mxu0 0.0
    %762 = vmatpush.msra.mxu0 0.0
    %763 = vmatpush.msra.mxu0 0.0
    %764 = vmatpush.msra.mxu0 0.0
    %765 = vmatpush.msra.mxu0 0.0
    %766 = vmatpush.msra.mxu0 0.0
    %767 = vmatpush.msra.mxu0 0.0
    %768 = vmatpush.msra.mxu0 0.0
    %769 = vmatpush.msra.mxu0 0.0
    %770 = vmatpush.msra.mxu0 0.0
    %771 = vmatpush.msra.mxu0 0.0
    %772 = vmatpush.msra.mxu0 %v27
    %773 = vmatmul.f32.gmra.mxu0 %v755
    %v774 = vpop.f32.mrf.mxu0
    %v775 = vadd.f32 0.0, %v774
    %776 = vdwg.mxu0
    %v778 = vrot.slane %v775, 2
    %v780 = vadd.f32 %v68, %v778
    %v781 = vxor.u32 %v780, 2147483648
    %v782 = vmul.f32 %v781, 1.442695
    %v783 = vpow.pop %v782
    %v784 = vadd.f32 %v783, 1.0
    %v785 = vrcp.pop %v784
    %v786 = vmul.f32 %v784, %v785
    %v787 = vsub.f32 1.0, %v786
    %v788 = vmul.f32 %v785, %v787
    %v789 = vadd.f32 %v785, %v788
    %vm790 = vweird.f32 %v784
    %vm791 = vweird.f32 %v785
    %vm792 = vmor %vm790, %vm791
    %v793 = vsel %vm792, %v785, %v789
    %v794 = vand.u32 2147483647, %v784
    %vm795 = vcmp.eq.f32.partialorder %v794, 8.507059e+37
    %v796 = vand.u32 %v784, 2147483648
    %v797 = vor.u32 1.1754944e-38, %v796
    %v798 = vsel %vm795, %v797, %v793
    %v799 = vmul.f32 1.0, %v798
    %v800 = vadd.f32 %v775, %v117
    %v802 = vrot.slane %v800, 2
    %803 = vrot.lane.b32.xlu0 %v802, 112
    %v804 = vpop.permute.xlu0 %803
    %v806 = vmul.f32 %v799, %v804
    %808 = vrot.lane.b32.xlu0 %v806, 16
    %v809 = vpop.permute.xlu0 %808
    %v811 = vadd.f32 %v68, %v809
    %v812 = vtanh.pop %v811
    %v814 = vrot.slane %v812, 6
    %v816 = vsub.f32 %v751, %v814
    %v818 = vrot.slane %v816, 2
    %819 = vrot.lane.b32.xlu0 %v818, 120
    %v820 = vpop.permute.xlu0 %819
    %v822 = vmul.f32 %v799, %v820
    %824 = vrot.lane.b32.xlu0 %v822, 8
    %v825 = vpop.permute.xlu0 %824
    %v827 = vadd.f32 %v812, %v825
    %vm828 = vcmp.gt.s32.totalorder %v30, 7
    %v829 = vsel %vm828, 1, 0
    %v830 = vcvt.s32.f32 %v829
    %832 = vset.pattern.permute.xlu0 0
    %833 = vperm.xlu0 %832, %v830
    %v834 = vpop.permute.xlu0 %833
    %v837 = vrot.slane %v827, 6
    %838 = vrot.lane.b32.xlu0 %v837, 112
    %v839 = vpop.permute.xlu0 %838
    %v841 = vmul.f32 %v834, %v839
    %v842 = vrot.slane %v751, 2
    %v844 = vsub.f32 %v827, %v842
    %v846 = vrot.slane %v844, 6
    %847 = vrot.lane.b32.xlu0 %v846, 112
    %v848 = vpop.permute.xlu0 %847
    %v850 = vmul.f32 %v834, %v848
    %852 = vrot.lane.b32.xlu0 %v850, 16
    %v853 = vpop.permute.xlu0 %852
    %v855 = vadd.f32 %v751, %v853
    %857 = vrot.lane.b32.xlu0 %v150, 112
    %v858 = vpop.permute.xlu0 %857
    %861 = vrot.lane.b32.xlu0 %v241, 8
    %v862 = vpop.permute.xlu0 %861
    %865 = vrot.lane.b32.xlu0 %v345, 16
    %v866 = vpop.permute.xlu0 %865
    %869 = vrot.lane.b32.xlu0 %v449, 24
    %v870 = vpop.permute.xlu0 %869
    %873 = vrot.lane.b32.xlu0 %v540, 16
    %v874 = vpop.permute.xlu0 %873
    %877 = vrot.lane.b32.xlu0 %v633, 40
    %v878 = vpop.permute.xlu0 %877
    %881 = vrot.lane.b32.xlu0 %v737, 48
    %v882 = vpop.permute.xlu0 %881
    %885 = vrot.lane.b32.xlu0 %v841, 56
    %v886 = vpop.permute.xlu0 %885
    %v888 = vsel %vm70, %v858, %v862
    %vm889 = vcmask 130048
    %v890 = vsel %vm889, %v888, %v866
    %vm891 = vcmask 195584
    %v892 = vsel %vm891, %v890, %v870
    %vm893 = vcmask 261120
    %v894 = vsel %vm893, %v892, %v874
    %vm895 = vcmask 326656
    %v896 = vsel %vm895, %v894, %v878
    %vm897 = vcmask 392192
    %v898 = vsel %vm897, %v896, %v882
    %vm899 = vcmask 457728
    %v900 = vsel %vm899, %v898, %v886
    %vm901 = vcmask 517120
    %902 = vst.msk [vmem:[%s6] sm:$0x3] %vm901, %v900
    %904 = vrot.lane.b32.xlu0 %v855, 112
    %v905 = vpop.permute.xlu0 %904
    %vm907 = vcmask 58368
    %908 = vst.msk [vmem:[#allocation2] sm:$0x3] %vm907, %v905
    // Predicated region
    $region26: #{encoder_forward.1} parent=1 // pred_check
      _
    $region27: #{encoder_forward.1} parent=1 // pred_check_branch
      %910 = sbr.rel (0) target = $region29
    $region28: #{encoder_forward.1} parent=1 // pred_region
      _
    $region29: #{encoder_forward.1} parent=1 // pred_fallthru
      _
    // Predicated region
    $region30: #{encoder_forward.1} parent=1 // pred_check
      _
    $region31: #{encoder_forward.1} parent=1 // pred_check_branch
      %912 = sbr.rel (0) target = $region33
    $region32: #{encoder_forward.1} parent=1 // pred_region
      %914 = vsyncadd [#allocation3], 0
      %s916 = sshll.u32 [#allocation2], 4
      %s917 = int_to_ptr.vmem [resolvable:$true] %s916
      %s918 = sshll.u32 %s7, 4
      %s919 = int_to_ptr.hbm [resolvable:$true] %s918
      %921 = dma.vmem_to_hbm [thread:$0]  %s917, 32, %s919, [#allocation3]
    $region33: #{encoder_forward.1} parent=1 // pred_fallthru
      _
    // Predicated region
    $region34: #{encoder_forward.1} parent=1 // pred_check
      _
    $region35: #{encoder_forward.1} parent=1 // pred_check_branch
      %923 = sbr.rel (0) target = $region37
    $region36: #{encoder_forward.1} parent=1 // pred_region
      _
    $region37: #{encoder_forward.1} parent=1 // pred_fallthru
      _
    // Predicated region
    $region38: #{encoder_forward.1} parent=1 // pred_check
      _
    $region39: #{encoder_forward.1} parent=1 // pred_check_branch
      %925 = sbr.rel (0) target = $region41
    $region40: #{encoder_forward.1} parent=1 // pred_region
      %927 = dma.done [#allocation3], 32
    $region41: #{encoder_forward.1} parent=1 // pred_fallthru
      _
    %928 = vsyncpa [#allocation3], 1

</llo_original>
